<compile_context>
chip_gen: v7x
topology: tpu7x:2x2x1
jax: 0.10.0
libtpu: 0.0.40
codegen_flags: <defaults>
</compile_context>

<pallas_src>
import functools

import numpy as np

import jax
import jax.numpy as jnp
from jax.experimental import pallas as pl
from jax.experimental.pallas import tpu as pltpu


def _round_up(x, m):
    return -(-x // m) * m


# ---------------------------------------------------------------------------
# Fused kernel: embedding + multi-size conv + ReLU + max-pool + concat + FC
# ---------------------------------------------------------------------------
def _min_cnn_fused_kernel(ids_ref, table_ref, w_ref, b_ref, mask_ref,
                          fcw_ref, fcb_ref, o_ref, *, tb, h_max):
    # ids_ref   : (TB*L_emb, 1) int32   padded token ids for this batch tile
    # table_ref : (V, E)                embedding table (VMEM resident)
    # w_ref     : (HE_pad, SF_pad)      K-stacked conv weights (zero-padded)
    # b_ref     : (1, SF_pad)           stacked conv bias (zero-padded)
    # mask_ref  : (L_out_pad, SF_pad)   1.0 at valid (t, filter-size) pairs
    # fcw_ref   : (SF_pad, C_pad)       fc weight, pre-transposed, zero-padded
    # fcb_ref   : (1, C_pad)            fc bias, zero-padded
    # o_ref     : (TB, C_pad)           logits for this batch tile
    m_emb, _ = ids_ref.shape
    v, e = table_ref.shape
    he_pad, sf_pad = w_ref.shape
    l_out_pad = mask_ref.shape[0]
    l_emb = m_emb // tb

    # --- Embedding: one-hot @ table, computed ONCE for all taps (MXU) -------
    ids = ids_ref[...]                                        # (M_emb, 1)
    iota = jax.lax.broadcasted_iota(jnp.int32, (m_emb, v), 1)
    onehot = jnp.where(iota == ids, 1.0, 0.0).astype(table_ref.dtype)
    emb = jnp.dot(onehot, table_ref[...],
                  preferred_element_type=jnp.float32)         # (M_emb, E) f32

    # --- Build K-stacked windows: x_win[m, dh*E + e] = emb[b, t+dh, e] ------
    emb3 = emb.reshape(tb, l_emb, e)
    parts = [emb3[:, dh:dh + l_out_pad, :] for dh in range(h_max)]
    if he_pad > h_max * e:
        parts.append(jnp.zeros((tb, l_out_pad, he_pad - h_max * e),
                               jnp.float32))
    x_win = jnp.concatenate(parts, axis=-1)                   # (TB, Lo, HE_pad)
    x_win = x_win.reshape(tb * l_out_pad, he_pad).astype(w_ref.dtype)

    # --- All filter sizes in ONE K=HE_pad matmul, bias + ReLU ---------------
    acc = jnp.dot(x_win, w_ref[...], preferred_element_type=jnp.float32)
    acc = jnp.maximum(acc + b_ref[...], 0.0)                  # (M, SF_pad) f32

    # --- Mask invalid (t, filter) pairs (ReLU>=0 so max unaffected), pool ---
    acc = acc.reshape(tb, l_out_pad, sf_pad) * mask_ref[...][None, :, :]
    pooled = jnp.max(acc, axis=1)                             # (TB, SF_pad)

    # --- Fully connected (dropout is identity at inference) -----------------
    # TODO(synk): training-mode dropout not implemented (identity at inference).
    pooled = pooled.astype(fcw_ref.dtype)
    o_ref[...] = (jnp.dot(pooled, fcw_ref[...],
                          preferred_element_type=jnp.float32) + fcb_ref[...])


def min_cnn_forward(xb, params, *, filter_sizes, batch_tile=8,
                    compute_dtype=jnp.float32):
    # xb: int32 token ids [B, L]; returns logits [B, num_labels] float32.
    b_sz, l = xb.shape
    table = params["embedding"]
    v, e = table.shape
    f = params[f"conv{filter_sizes[0]}_w"].shape[1]
    s = len(filter_sizes)
    sf = s * f
    c = params["fc_w"].shape[0]
    h_max = max(filter_sizes)
    h_min = min(filter_sizes)
    assert h_max <= l, "filter size exceeds sequence length (PyTorch would error)"

    # --- padded sizes (sublane multiples of 8, lane multiples of 128) -------
    l_out = l - h_min + 1                  # max #valid positions over sizes
    l_out_pad = _round_up(l_out, 8)
    l_emb_pad = _round_up(l_out_pad + h_max - 1, 8)
    he = h_max * e
    he_pad = _round_up(he, 128)
    sf_pad = _round_up(sf, 128)
    c_pad = _round_up(c, 128)

    # --- batch tiling: fold batch*time into the MXU M dimension -------------
    if b_sz <= batch_tile:
        tb = b_sz                          # single grid step, block == array
        b_pad = b_sz
    else:
        tb = batch_tile                    # multiple of 8 -> aligned blocks
        b_pad = _round_up(b_sz, tb)

    # --- one-time wrapper-side layout plumbing (no in-kernel transposes) ----
    # Padded ids: positions beyond L reuse token 0; those taps only ever meet
    # zero weights or masked positions (do not remove/reorder the mask!).
    xb_pad = jnp.pad(xb, ((0, b_pad - b_sz), (0, l_emb_pad - l)))
    ids = xb_pad.reshape(b_pad * l_emb_pad, 1).astype(jnp.int32)

    # K-stacked conv weights [h_max*E, SF_pad]; taps beyond each filter's
    # height and padded lanes are zero.
    w_all = jnp.zeros((h_max, e, sf_pad), jnp.float32)
    bias_all = jnp.zeros((1, sf_pad), jnp.float32)
    for si, h in enumerate(filter_sizes):
        w = params[f"conv{h}_w"]                              # (h, F, E)
        w_all = w_all.at[:h, :, si * f:(si + 1) * f].set(
            jnp.transpose(w, (0, 2, 1)))
        bias_all = bias_all.at[0, si * f:(si + 1) * f].set(params[f"conv{h}_b"])
    w_all = w_all.reshape(he, sf_pad)
    if he_pad > he:
        w_all = jnp.pad(w_all, ((0, he_pad - he), (0, 0)))
    w_all = w_all.astype(compute_dtype)

    # Validity mask (time position, filter-size), built once (not tiled by tb).
    mask_np = np.zeros((l_out_pad, sf_pad), np.float32)
    for si, h in enumerate(filter_sizes):
        mask_np[:l - h + 1, si * f:(si + 1) * f] = 1.0
    mask = jnp.asarray(mask_np)

    fc_wt = jnp.zeros((sf_pad, c_pad), jnp.float32)
    fc_wt = fc_wt.at[:sf, :c].set(params["fc_w"].T).astype(compute_dtype)
    fc_b = jnp.zeros((1, c_pad), jnp.float32).at[0, :c].set(params["fc_b"])
    table_c = table.astype(compute_dtype)

    kernel = functools.partial(_min_cnn_fused_kernel, tb=tb, h_max=h_max)
    out = pl.pallas_call(
        kernel,
        out_shape=jax.ShapeDtypeStruct((b_pad, c_pad), jnp.float32),
        grid_spec=pltpu.PrefetchScalarGridSpec(
            num_scalar_prefetch=0,
            grid=(b_pad // tb,),
            in_specs=[
                pl.BlockSpec((tb * l_emb_pad, 1), lambda i: (i, 0)),
                pl.BlockSpec((v, e), lambda i: (0, 0)),
                pl.BlockSpec((he_pad, sf_pad), lambda i: (0, 0)),
                pl.BlockSpec((1, sf_pad), lambda i: (0, 0)),
                pl.BlockSpec((l_out_pad, sf_pad), lambda i: (0, 0)),
                pl.BlockSpec((sf_pad, c_pad), lambda i: (0, 0)),
                pl.BlockSpec((1, c_pad), lambda i: (0, 0)),
            ],
            out_specs=pl.BlockSpec((tb, c_pad), lambda i: (i, 0)),
        ),
        compiler_params=pltpu.CompilerParams(
            dimension_semantics=("parallel",),
            vmem_limit_bytes=32 * 1024 * 1024,
        ),
    )(ids, table_c, w_all, bias_all, mask, fc_wt, fc_b)
    return out[:b_sz, :c]


# ---------------------------------------------------------------------------
# Deterministic parameter construction + pure-JAX reference check
# ---------------------------------------------------------------------------
def make_params(key, *, vocab, embed_dim, num_filters, filter_sizes, num_labels):
    keys = jax.random.split(key, 3 + 2 * len(filter_sizes))
    params = {
        "embedding": jax.random.normal(
            keys[0], (vocab, embed_dim), jnp.float32
        ) * 0.1
    }
    for i, h in enumerate(filter_sizes):
        params[f"conv{h}_w"] = jax.random.normal(
            keys[1 + 2 * i], (h, num_filters, embed_dim), jnp.float32
        ) * 0.1
        params[f"conv{h}_b"] = jax.random.normal(
            keys[2 + 2 * i], (num_filters,), jnp.float32
        ) * 0.1
    params["fc_w"] = jax.random.normal(
        keys[-2], (num_labels, num_filters * len(filter_sizes)), jnp.float32
    ) * 0.1
    params["fc_b"] = jax.random.normal(
        keys[-1], (num_labels,), jnp.float32
    ) * 0.1
    return params


def min_cnn_reference(xb, params, *, filter_sizes):
    emb = jnp.take(params["embedding"], xb, axis=0)  # [B, L, E]
    feats = []
    for h in filter_sizes:
        w = params[f"conv{h}_w"]     # [h, F, E]
        b = params[f"conv{h}_b"]     # [F]
        l = emb.shape[1]
        l_out = l - h + 1
        acc = sum(
            jnp.einsum("ble,fe->blf", emb[:, dh:dh + l_out, :], w[dh])
            for dh in range(h)
        )
        acc = jax.nn.relu(acc + b[None, None, :])
        feats.append(jnp.max(acc, axis=1))  # [B, F]
    out = jnp.concatenate(feats, axis=1)
    return out @ params["fc_w"].T + params["fc_b"][None, :]


if __name__ == "__main__":
    # Small config consistent with the module's forward:
    B, L = 2, 8               # batch, sequence length
    VOCAB, E = 50, 32         # vocab size, embedding dim
    NUM_FILTERS = 4           # config.num_of_filter
    FILTER_SIZES = (2, 3, 4)  # config.filter_size
    NUM_LABELS = 3            # config.num_of_labels

    key = jax.random.PRNGKey(0)
    k_tok, k_par = jax.random.split(key)
    xb = jax.random.randint(k_tok, (B, L), 0, VOCAB, dtype=jnp.int32)
    params = make_params(
        k_par,
        vocab=VOCAB,
        embed_dim=E,
        num_filters=NUM_FILTERS,
        filter_sizes=FILTER_SIZES,
        num_labels=NUM_LABELS,
    )

    out = min_cnn_forward(xb, params, filter_sizes=FILTER_SIZES)
    out = jax.block_until_ready(out)

    ref = min_cnn_reference(xb, params, filter_sizes=FILTER_SIZES)
    assert out.shape == (B, NUM_LABELS)
    assert jnp.allclose(out, ref, atol=1e-4, rtol=1e-4), (out, ref)

    print("KERNEL_OK")
</pallas_src>

<mosaic_0001>
module attributes {stable_mosaic.version = 11 : i64} {
  func.func @_min_cnn_fused_kernel(%arg0: i32, %arg1: memref<32x1xi32, #tpu.memory_space<vmem>>, %arg2: memref<50x32xf32, #tpu.memory_space<vmem>>, %arg3: memref<128x128xf32, #tpu.memory_space<vmem>>, %arg4: memref<1x128xf32, #tpu.memory_space<vmem>>, %arg5: memref<8x128xf32, #tpu.memory_space<vmem>>, %arg6: memref<128x128xf32, #tpu.memory_space<vmem>>, %arg7: memref<1x128xf32, #tpu.memory_space<vmem>>, %arg8: memref<2x128xf32, #tpu.memory_space<vmem>>) attributes {dimension_semantics = [#tpu.dimension_semantics<parallel>], iteration_bounds = array<i64: 1>, scalar_prefetch = 0 : i64, scratch_operands = 0 : i64, tpu.core_type = #tpu.core_type<tc>, window_params = [{transform_indices = @transform_0, window_bounds = array<i64: 32, 1>}, {pipeline_mode = #tpu.pipeline_mode<synchronous>, transform_indices = @transform_1, window_bounds = array<i64: 50, 32>}, {pipeline_mode = #tpu.pipeline_mode<synchronous>, transform_indices = @transform_2, window_bounds = array<i64: 128, 128>}, {pipeline_mode = #tpu.pipeline_mode<synchronous>, transform_indices = @transform_3, window_bounds = array<i64: 1, 128>}, {pipeline_mode = #tpu.pipeline_mode<synchronous>, transform_indices = @transform_4, window_bounds = array<i64: 8, 128>}, {pipeline_mode = #tpu.pipeline_mode<synchronous>, transform_indices = @transform_5, window_bounds = array<i64: 128, 128>}, {pipeline_mode = #tpu.pipeline_mode<synchronous>, transform_indices = @transform_6, window_bounds = array<i64: 1, 128>}, {transform_indices = @transform_7, window_bounds = array<i64: 2, 128>}]} {
    %c0 = arith.constant 0 : index
    %c0_0 = arith.constant 0 : index
    %0 = vector.load %arg1[%c0, %c0_0] : memref<32x1xi32, #tpu.memory_space<vmem>>, vector<32x1xi32>
    %1 = tpu.iota {dimensions = array<i32: 1>} : vector<32x50xi32>
    %2 = vector.broadcast %0 : vector<32x1xi32> to vector<32x50xi32>
    %3 = arith.cmpi eq, %1, %2 : vector<32x50xi32>
    %cst = arith.constant 1.000000e+00 : f32
    %cst_1 = arith.constant 0.000000e+00 : f32
    %4 = vector.broadcast %cst : f32 to vector<32x50xf32>
    %5 = vector.broadcast %cst_1 : f32 to vector<32x50xf32>
    %6 = arith.select %3, %4, %5 : vector<32x50xi1>, vector<32x50xf32>
    %c0_2 = arith.constant 0 : index
    %c0_3 = arith.constant 0 : index
    %7 = vector.load %arg2[%c0_2, %c0_3] : memref<50x32xf32, #tpu.memory_space<vmem>>, vector<50x32xf32>
    %cst_4 = arith.constant dense<0.000000e+00> : vector<32x32xf32>
    %8 = tpu.matmul %6, %7, %cst_4 {dimension_numbers = #tpu.dot_dimension_numbers<[1], [0], [0], [1], [0, 0, 1, 1], [], []>} : vector<32x50xf32>, vector<50x32xf32>, vector<32x32xf32> -> vector<32x32xf32>
    %9 = vector.shape_cast %8 : vector<32x32xf32> to vector<2x16x32xf32>
    %10 = vector.extract_strided_slice %9 {offsets = [0, 0, 0], sizes = [2, 8, 32], strides = [1, 1, 1]} : vector<2x16x32xf32> to vector<2x8x32xf32>
    %11 = vector.extract_strided_slice %9 {offsets = [0, 1, 0], sizes = [2, 8, 32], strides = [1, 1, 1]} : vector<2x16x32xf32> to vector<2x8x32xf32>
    %12 = vector.extract_strided_slice %9 {offsets = [0, 2, 0], sizes = [2, 8, 32], strides = [1, 1, 1]} : vector<2x16x32xf32> to vector<2x8x32xf32>
    %13 = vector.extract_strided_slice %9 {offsets = [0, 3, 0], sizes = [2, 8, 32], strides = [1, 1, 1]} : vector<2x16x32xf32> to vector<2x8x32xf32>
    %14 = tpu.concatenate %10, %11, %12, %13 in 2 : vector<2x8x32xf32>, vector<2x8x32xf32>, vector<2x8x32xf32>, vector<2x8x32xf32> -> vector<2x8x128xf32>
    %15 = vector.shape_cast %14 : vector<2x8x128xf32> to vector<16x128xf32>
    %c0_5 = arith.constant 0 : index
    %c0_6 = arith.constant 0 : index
    %16 = vector.load %arg3[%c0_5, %c0_6] : memref<128x128xf32, #tpu.memory_space<vmem>>, vector<128x128xf32>
    %cst_7 = arith.constant dense<0.000000e+00> : vector<16x128xf32>
    %17 = tpu.matmul %15, %16, %cst_7 {dimension_numbers = #tpu.dot_dimension_numbers<[1], [0], [0], [1], [0, 0, 1, 1], [], []>} : vector<16x128xf32>, vector<128x128xf32>, vector<16x128xf32> -> vector<16x128xf32>
    %c0_8 = arith.constant 0 : index
    %c0_9 = arith.constant 0 : index
    %18 = vector.load %arg4[%c0_8, %c0_9] : memref<1x128xf32, #tpu.memory_space<vmem>>, vector<1x128xf32>
    %19 = vector.broadcast %18 : vector<1x128xf32> to vector<16x128xf32>
    %20 = arith.addf %17, %19 : vector<16x128xf32>
    %cst_10 = arith.constant 0.000000e+00 : f32
    %21 = vector.broadcast %cst_10 : f32 to vector<16x128xf32>
    %22 = arith.maximumf %20, %21 : vector<16x128xf32>
    %23 = vector.shape_cast %22 : vector<16x128xf32> to vector<2x8x128xf32>
    %c0_11 = arith.constant 0 : index
    %c0_12 = arith.constant 0 : index
    %24 = vector.load %arg5[%c0_11, %c0_12] : memref<8x128xf32, #tpu.memory_space<vmem>>, vector<8x128xf32>
    %25 = vector.shape_cast %24 : vector<8x128xf32> to vector<1x8x128xf32>
    %26 = vector.broadcast %25 : vector<1x8x128xf32> to vector<2x8x128xf32>
    %27 = arith.mulf %23, %26 : vector<2x8x128xf32>
    %cst_13 = arith.constant dense<0xFF800000> : vector<2x128xf32>
    %28 = vector.multi_reduction <maximumf>, %27, %cst_13 [1] : vector<2x8x128xf32> to vector<2x128xf32>
    %c0_14 = arith.constant 0 : index
    %c0_15 = arith.constant 0 : index
    %29 = vector.load %arg6[%c0_14, %c0_15] : memref<128x128xf32, #tpu.memory_space<vmem>>, vector<128x128xf32>
    %cst_16 = arith.constant dense<0.000000e+00> : vector<2x128xf32>
    %30 = tpu.matmul %28, %29, %cst_16 {dimension_numbers = #tpu.dot_dimension_numbers<[1], [0], [0], [1], [0, 0, 1, 1], [], []>} : vector<2x128xf32>, vector<128x128xf32>, vector<2x128xf32> -> vector<2x128xf32>
    %c0_17 = arith.constant 0 : index
    %c0_18 = arith.constant 0 : index
    %31 = vector.load %arg7[%c0_17, %c0_18] : memref<1x128xf32, #tpu.memory_space<vmem>>, vector<1x128xf32>
    %32 = vector.broadcast %31 : vector<1x128xf32> to vector<2x128xf32>
    %33 = arith.addf %30, %32 : vector<2x128xf32>
    %c0_19 = arith.constant 0 : index
    %c0_20 = arith.constant 0 : index
    %34 = vector.load %arg8[%c0_19, %c0_20] : memref<2x128xf32, #tpu.memory_space<vmem>>, vector<2x128xf32>
    tpu.vector_store %arg8[%c0_19, %c0_20], %33 {strides = array<i32>} : memref<2x128xf32, #tpu.memory_space<vmem>>, vector<2x128xf32>,
    return
  }
  func.func @transform_0(%arg0: i32) -> (i32, i32) {
    %c0_i32 = arith.constant 0 : i32
    %c0_i32_0 = arith.constant 0 : i32
    return %arg0, %c0_i32 : i32, i32
  }
  func.func @transform_1(%arg0: i32) -> (i32, i32) {
    %c0_i32 = arith.constant 0 : i32
    %c0_i32_0 = arith.constant 0 : i32
    %c0_i32_1 = arith.constant 0 : i32
    return %c0_i32, %c0_i32_0 : i32, i32
  }
  func.func @transform_2(%arg0: i32) -> (i32, i32) {
    %c0_i32 = arith.constant 0 : i32
    %c0_i32_0 = arith.constant 0 : i32
    %c0_i32_1 = arith.constant 0 : i32
    return %c0_i32, %c0_i32_0 : i32, i32
  }
  func.func @transform_3(%arg0: i32) -> (i32, i32) {
    %c0_i32 = arith.constant 0 : i32
    %c0_i32_0 = arith.constant 0 : i32
    %c0_i32_1 = arith.constant 0 : i32
    return %c0_i32, %c0_i32_0 : i32, i32
  }
  func.func @transform_4(%arg0: i32) -> (i32, i32) {
    %c0_i32 = arith.constant 0 : i32
    %c0_i32_0 = arith.constant 0 : i32
    %c0_i32_1 = arith.constant 0 : i32
    return %c0_i32, %c0_i32_0 : i32, i32
  }
  func.func @transform_5(%arg0: i32) -> (i32, i32) {
    %c0_i32 = arith.constant 0 : i32
    %c0_i32_0 = arith.constant 0 : i32
    %c0_i32_1 = arith.constant 0 : i32
    return %c0_i32, %c0_i32_0 : i32, i32
  }
  func.func @transform_6(%arg0: i32) -> (i32, i32) {
    %c0_i32 = arith.constant 0 : i32
    %c0_i32_0 = arith.constant 0 : i32
    %c0_i32_1 = arith.constant 0 : i32
    return %c0_i32, %c0_i32_0 : i32, i32
  }
  func.func @transform_7(%arg0: i32) -> (i32, i32) {
    %c0_i32 = arith.constant 0 : i32
    %c0_i32_0 = arith.constant 0 : i32
    return %arg0, %c0_i32 : i32, i32
  }
}

</mosaic_0001>

<llo_original>
// kernel: tpu_custom_call.1
$region0: #{tpu_custom_call.1}
  #allocation0 [shape = 'u32[]', space=smem, size = 0x4, offset = 0x4, fixed_abs, tag = 'smem constant byte address 0x4 - core index']
  #allocation1 [shape = 'u32[144,128]{1,0:T(1,128)}', space=vmem, size = 0x12000, scoped, tag = 'internal scratch']
  %s0 = inlined_call_operand.vmem [shape: s32[32,1], index: 0, kind: input, shape index: {}]
  %s1 = inlined_call_operand.vmem [shape: f32[50,32], index: 1, kind: input, shape index: {}]
  %s2 = inlined_call_operand.vmem [shape: f32[128,128], index: 2, kind: input, shape index: {}]
  %s3 = inlined_call_operand.hbm [shape: f32[1,128], index: 3, kind: input, shape index: {}]
  %s4 = inlined_call_operand.vmem [shape: f32[8,128], index: 4, kind: input, shape index: {}]
  %s5 = inlined_call_operand.hbm [shape: f32[128,128], index: 5, kind: input, shape index: {}]
  %s6 = inlined_call_operand.vmem [shape: f32[1,128], index: 6, kind: input, shape index: {}]
  %s7 = inlined_call_operand.hbm [shape: f32[2,128], index: 7, kind: output, shape index: {}]
  %s8 = sld [smem:[#allocation0]]
  $region46: #{tpu_custom_call.1} parent=0
    _
  %s10 = ssub.s32 1, %s8
  %s11 = scalar_select 0, %s10, %s8
  $region1: #{tpu_custom_call.1} parent=0
    #allocation2 [shape = 'u8[512]{0}', space=vmem, size = 0x400, scoped, tag = 'input window, operand 3, single buffered']
    #allocation3 [shape = 's32[1]{0}', space=sflag, size = 0x4, scoped, tag = 'scoped memory for tpu_custom_call.1']
    #allocation4 [shape = 's32[1]{0}', space=sflag, size = 0x4, scoped, tag = 'scoped memory for tpu_custom_call.1']
    #allocation5 [shape = 'u8[65536]{0}', space=vmem, size = 0x10000, scoped, tag = 'input window, operand 5, single buffered']
    #allocation6 [shape = 's32[1]{0}', space=sflag, size = 0x4, scoped, tag = 'scoped memory for tpu_custom_call.1']
    #allocation7 [shape = 'u8[1024]{0}', space=vmem, size = 0x400, scoped, tag = 'output window, operand 0, single buffered']
    %12 = vsyncpa [#allocation3], 0
    %13 = vsyncpa [#allocation6], 0
    %14 = vsyncpa [#allocation4], 0
    // Predicated region
    $region2: #{tpu_custom_call.1} parent=1 // pred_check
      _
    $region3: #{tpu_custom_call.1} parent=1 // pred_check_branch
      %16 = sbr.rel (0) target = $region5
    $region4: #{tpu_custom_call.1} parent=1 // pred_region
      _
    $region5: #{tpu_custom_call.1} parent=1 // pred_fallthru
      _
    // Predicated region
    $region6: #{tpu_custom_call.1} parent=1 // pred_check
      _
    $region7: #{tpu_custom_call.1} parent=1 // pred_check_branch
      %18 = sbr.rel (0) target = $region9
    $region8: #{tpu_custom_call.1} parent=1 // pred_region
      _
    $region9: #{tpu_custom_call.1} parent=1 // pred_fallthru
      _
    // Predicated region
    $region10: #{tpu_custom_call.1} parent=1 // pred_check
      _
    $region11: #{tpu_custom_call.1} parent=1 // pred_check_branch
      %20 = sbr.rel (0) target = $region13
    $region12: #{tpu_custom_call.1} parent=1 // pred_region
      _
    $region13: #{tpu_custom_call.1} parent=1 // pred_fallthru
      _
    // Predicated region
    $region14: #{tpu_custom_call.1} parent=1 // pred_check
      _
    $region15: #{tpu_custom_call.1} parent=1 // pred_check_branch
      %22 = sbr.rel (0) target = $region17
    $region16: #{tpu_custom_call.1} parent=1 // pred_region
      %s24 = ssub.s32 16, 16
      %25 = vsyncadd [#allocation3], %s24
      %s27 = sshll.u32 [#allocation2], 4
      %s28 = int_to_ptr.vmem [resolvable:$true] %s27
      %30 = dma.hbm_to_vmem [thread:$0]  %s3, 16, %s28, [#allocation3]
    $region17: #{tpu_custom_call.1} parent=1 // pred_fallthru
      _
    // Predicated region
    $region18: #{tpu_custom_call.1} parent=1 // pred_check
      _
    $region19: #{tpu_custom_call.1} parent=1 // pred_check_branch
      %32 = sbr.rel (0) target = $region21
    $region20: #{tpu_custom_call.1} parent=1 // pred_region
      _
    $region21: #{tpu_custom_call.1} parent=1 // pred_fallthru
      _
    // Predicated region
    $region22: #{tpu_custom_call.1} parent=1 // pred_check
      _
    $region23: #{tpu_custom_call.1} parent=1 // pred_check_branch
      %34 = sbr.rel (0) target = $region25
    $region24: #{tpu_custom_call.1} parent=1 // pred_region
      %s36 = ssub.s32 2048, 2048
      %37 = vsyncadd [#allocation6], %s36
      %s38 = sshll.u32 [#allocation5], 4
      %s39 = int_to_ptr.vmem [resolvable:$true] %s38
      %44 = dma.hbm_to_vmem [thread:$0]  %s5, 2048, %s39, [#allocation6], 128, 128, 8
    $region25: #{tpu_custom_call.1} parent=1 // pred_fallthru
      _
    // Predicated region
    $region26: #{tpu_custom_call.1} parent=1 // pred_check
      _
    $region27: #{tpu_custom_call.1} parent=1 // pred_check_branch
      %46 = sbr.rel (0) target = $region29
    $region28: #{tpu_custom_call.1} parent=1 // pred_region
      _
    $region29: #{tpu_custom_call.1} parent=1 // pred_fallthru
      _
    // Predicated region
    $region30: #{tpu_custom_call.1} parent=1 // pred_check
      _
    $region31: #{tpu_custom_call.1} parent=1 // pred_check_branch
      %48 = sbr.rel (0) target = $region33
    $region32: #{tpu_custom_call.1} parent=1 // pred_region
      %49 = dma.done [#allocation3], 16
    $region33: #{tpu_custom_call.1} parent=1 // pred_fallthru
      _
    // Predicated region
    $region34: #{tpu_custom_call.1} parent=1 // pred_check
      _
    $region35: #{tpu_custom_call.1} parent=1 // pred_check_branch
      %51 = sbr.rel (0) target = $region37
    $region36: #{tpu_custom_call.1} parent=1 // pred_region
      %52 = dma.done [#allocation6], 2048
    $region37: #{tpu_custom_call.1} parent=1 // pred_fallthru
      _
    %v53 = vld [vmem:[%s0] sm:$0xff]
    %v54 = vld [vmem:[%s0 + $0x8] sm:$0xff]
    %v55 = vld [vmem:[%s0 + $0x10] sm:$0xff]
    %v56 = vld [vmem:[%s0 + $0x18] sm:$0xff]
    %v57 = vlaneseq
    %v58 = vand.u32 %v57, 127
    %59 = vset.pattern.permute.xlu0 0
    %60 = vperm.xlu0 %59, %v53
    %v61 = vpop.permute.xlu0 %60
    %62 = vset.pattern.permute.xlu0 0
    %63 = vperm.xlu0 %62, %v54
    %v64 = vpop.permute.xlu0 %63
    %65 = vset.pattern.permute.xlu0 0
    %66 = vperm.xlu0 %65, %v55
    %v67 = vpop.permute.xlu0 %66
    %68 = vset.pattern.permute.xlu0 0
    %69 = vperm.xlu0 %68, %v56
    %v70 = vpop.permute.xlu0 %69
    %vm71 = vcmp.eq.s32.totalorder %v58, %v61
    %vm72 = vcmp.eq.s32.totalorder %v58, %v64
    %vm73 = vcmp.eq.s32.totalorder %v58, %v67
    %vm74 = vcmp.eq.s32.totalorder %v58, %v70
    %v75 = vsel %vm71, 1.0, 0.0
    %v76 = vsel %vm72, 1.0, 0.0
    %v77 = vsel %vm73, 1.0, 0.0
    %v78 = vsel %vm74, 1.0, 0.0
    %v79 = vld [vmem:[%s1] sm:$0xff]
    %v80 = vld [vmem:[%s1 + $0x8] sm:$0xff]
    %v81 = vld [vmem:[%s1 + $0x10] sm:$0xff]
    %v82 = vld [vmem:[%s1 + $0x18] sm:$0xff]
    %v83 = vld [vmem:[%s1 + $0x20] sm:$0xff]
    %v84 = vld [vmem:[%s1 + $0x28] sm:$0xff]
    %v85 = vld [vmem:[%s1 + $0x30] sm:$0x3]
    %vm86 = vcmask 408576
    %v88 = vsel %vm86, %v75, 0
    %v91 = vsel %vm86, %v76, 0
    %v94 = vsel %vm86, %v77, 0
    %v97 = vsel %vm86, %v78, 0
    %vm99 = vcmask 1041408
    %v101 = vsel %vm99, %v85, 0
    %103 = vmatprep.subr.mxu0 0.0
    %104 = vmatpush1.msra.mxu0 %v79
    %105 = vmatprep.subr.mxu0 0.0
    %106 = vmatpush1.msra.mxu0 %v80
    %107 = vmatprep.subr.mxu0 0.0
    %108 = vmatpush1.msra.mxu0 %v81
    %109 = vmatprep.subr.mxu0 0.0
    %110 = vmatpush1.msra.mxu0 %v82
    %111 = vmatprep.subr.mxu0 0.0
    %112 = vmatpush1.msra.mxu0 %v83
    %113 = vmatprep.subr.mxu0 0.0
    %114 = vmatpush1.msra.mxu0 %v84
    %115 = vmatprep.subr.mxu0 0.0
    %116 = vmatpush1.msra.mxu0 %v101
    %117 = vmatprep.subr.mxu0 0.0
    %118 = vmatpush1.msra.mxu0 0.0
    %119 = vmatprep.subr.mxu0 0.0
    %120 = vmatpush1.msra.mxu0 0.0
    %121 = vmatprep.subr.mxu0 0.0
    %122 = vmatpush1.msra.mxu0 0.0
    %123 = vmatprep.subr.mxu0 0.0
    %124 = vmatpush1.msra.mxu0 0.0
    %125 = vmatprep.subr.mxu0 0.0
    %126 = vmatpush1.msra.mxu0 0.0
    %127 = vmatprep.subr.mxu0 0.0
    %128 = vmatpush1.msra.mxu0 0.0
    %129 = vmatprep.subr.mxu0 0.0
    %130 = vmatpush1.msra.mxu0 0.0
    %131 = vmatprep.subr.mxu0 0.0
    %132 = vmatpush1.msra.mxu0 0.0
    %133 = vmatprep.subr.mxu0 0.0
    %134 = vmatpush1.msra.mxu0 0.0
    %135 = vmatprep.subr.mxu0 0.0
    %136 = vmatpush1.msra.mxu0 0.0
    %137 = vmatprep.subr.mxu0 0.0
    %138 = vmatpush1.msra.mxu0 0.0
    %139 = vmatprep.subr.mxu0 0.0
    %140 = vmatpush1.msra.mxu0 0.0
    %141 = vmatprep.subr.mxu0 0.0
    %142 = vmatpush1.msra.mxu0 0.0
    %143 = vmatprep.subr.mxu0 0.0
    %144 = vmatpush1.msra.mxu0 0.0
    %145 = vmatprep.subr.mxu0 0.0
    %146 = vmatpush1.msra.mxu0 0.0
    %147 = vmatprep.subr.mxu0 0.0
    %148 = vmatpush1.msra.mxu0 0.0
    %149 = vmatprep.subr.mxu0 0.0
    %150 = vmatpush1.msra.mxu0 0.0
    %151 = vmatprep.subr.mxu0 0.0
    %152 = vmatpush1.msra.mxu0 0.0
    %153 = vmatprep.subr.mxu0 0.0
    %154 = vmatpush1.msra.mxu0 0.0
    %155 = vmatprep.subr.mxu0 0.0
    %156 = vmatpush1.msra.mxu0 0.0
    %157 = vmatprep.subr.mxu0 0.0
    %158 = vmatpush1.msra.mxu0 0.0
    %159 = vmatprep.subr.mxu0 0.0
    %160 = vmatpush1.msra.mxu0 0.0
    %161 = vmatprep.subr.mxu0 0.0
    %162 = vmatpush1.msra.mxu0 0.0
    %163 = vmatprep.subr.mxu0 0.0
    %164 = vmatpush1.msra.mxu0 0.0
    %165 = vmatprep.subr.mxu0 0.0
    %166 = vmatpush1.msra.mxu0 0.0
    %167 = vmatprep.mubr.f32.mxu0 0.0
    %168 = vmatmul.mubr.f32.gmra.mrb[0].mxu0 %v88
    %v169 = vpop.f32.mrb[0].mxu0
    %v170 = vadd.f32 0.0, %v169
    %v171 = vpop.f32.mrb[0].mxu0
    %172 = vmatprep.mubr.f32.mxu0 0.0
    %173 = vmatmul.mubr.f32.gmra.mrb[0].mxu0 %v91
    %v174 = vpop.f32.mrb[0].mxu0
    %v175 = vadd.f32 0.0, %v174
    %v176 = vpop.f32.mrb[0].mxu0
    %177 = vmatprep.mubr.f32.mxu0 0.0
    %178 = vmatmul.mubr.f32.gmra.mrb[0].mxu0 %v94
    %v179 = vpop.f32.mrb[0].mxu0
    %v180 = vadd.f32 0.0, %v179
    %v181 = vpop.f32.mrb[0].mxu0
    %182 = vmatprep.mubr.f32.mxu0 0.0
    %183 = vmatmul.mubr.f32.gmra.mrb[0].mxu0 %v97
    %v184 = vpop.f32.mrb[0].mxu0
    %v185 = vadd.f32 0.0, %v184
    %v186 = vpop.f32.mrb[0].mxu0
    %187 = vdwg.mxu0
    %vm192 = vcmask 1046528
    %v193 = vrot.slane %v170, 1
    %v194 = vrot.slane %v175, 1
    %v195 = vsel %vm192, %v193, %v194
    %v196 = vrot.slane %v180, 1
    %v197 = vrot.slane %v185, 1
    %v198 = vsel %vm192, %v196, %v197
    %199 = vrot.lane.b32.xlu0 %v195, 32
    %v200 = vpop.permute.xlu0 %199
    %201 = vrot.lane.b32.xlu0 %v198, 32
    %v202 = vpop.permute.xlu0 %201
    %vm205 = vcmask 1045504
    %v206 = vrot.slane %v170, 2
    %v207 = vrot.slane %v175, 2
    %v208 = vsel %vm205, %v206, %v207
    %v209 = vrot.slane %v180, 2
    %v210 = vrot.slane %v185, 2
    %v211 = vsel %vm205, %v209, %v210
    %212 = vrot.lane.b32.xlu0 %v208, 64
    %v213 = vpop.permute.xlu0 %212
    %214 = vrot.lane.b32.xlu0 %v211, 64
    %v215 = vpop.permute.xlu0 %214
    %vm218 = vcmask 1044480
    %v219 = vrot.slane %v170, 3
    %v220 = vrot.slane %v175, 3
    %v221 = vsel %vm218, %v219, %v220
    %v222 = vrot.slane %v180, 3
    %v223 = vrot.slane %v185, 3
    %v224 = vsel %vm218, %v222, %v223
    %225 = vrot.lane.b32.xlu0 %v221, 96
    %v226 = vpop.permute.xlu0 %225
    %227 = vrot.lane.b32.xlu0 %v224, 96
    %v228 = vpop.permute.xlu0 %227
    %vm231 = vcmask 261120
    %v232 = vsel %vm231, %v170, %v200
    %v233 = vsel %vm231, %v180, %v202
    %vm234 = vcmask 523264
    %v235 = vsel %vm234, %v232, %v213
    %v236 = vsel %vm234, %v233, %v215
    %vm237 = vcmask 785408
    %v238 = vsel %vm237, %v235, %v226
    %v239 = vsel %vm237, %v236, %v228
    %v240 = vld [vmem:[%s2] sm:$0xff]
    %v241 = vld [vmem:[%s2 + $0x8] sm:$0xff]
    %v242 = vld [vmem:[%s2 + $0x10] sm:$0xff]
    %v243 = vld [vmem:[%s2 + $0x18] sm:$0xff]
    %v244 = vld [vmem:[%s2 + $0x20] sm:$0xff]
    %v245 = vld [vmem:[%s2 + $0x28] sm:$0xff]
    %v246 = vld [vmem:[%s2 + $0x30] sm:$0xff]
    %v247 = vld [vmem:[%s2 + $0x38] sm:$0xff]
    %v248 = vld [vmem:[%s2 + $0x40] sm:$0xff]
    %v249 = vld [vmem:[%s2 + $0x48] sm:$0xff]
    %v250 = vld [vmem:[%s2 + $0x50] sm:$0xff]
    %v251 = vld [vmem:[%s2 + $0x58] sm:$0xff]
    %v252 = vld [vmem:[%s2 + $0x60] sm:$0xff]
    %v253 = vld [vmem:[%s2 + $0x68] sm:$0xff]
    %v254 = vld [vmem:[%s2 + $0x70] sm:$0xff]
    %v255 = vld [vmem:[%s2 + $0x78] sm:$0xff]
    %v256 = vld [vmem:[#allocation2] sm:$0x1]
    %v258 = vlaneseq
    %v259 = vshrl.u32 %v258, 7
    %v260 = vsub.s32 0, %v259
    %v261 = vrot.slane %v256, %v260
    %263 = vmatprep.subr.mxu0 0.0
    %264 = vmatpush1.msra.mxu0 %v240
    %265 = vmatprep.subr.mxu0 0.0
    %266 = vmatpush1.msra.mxu0 %v241
    %267 = vmatprep.subr.mxu0 0.0
    %268 = vmatpush1.msra.mxu0 %v242
    %269 = vmatprep.subr.mxu0 0.0
    %270 = vmatpush1.msra.mxu0 %v243
    %271 = vmatprep.subr.mxu0 0.0
    %272 = vmatpush1.msra.mxu0 %v244
    %273 = vmatprep.subr.mxu0 0.0
    %274 = vmatpush1.msra.mxu0 %v245
    %275 = vmatprep.subr.mxu0 0.0
    %276 = vmatpush1.msra.mxu0 %v246
    %277 = vmatprep.subr.mxu0 0.0
    %278 = vmatpush1.msra.mxu0 %v247
    %279 = vmatprep.subr.mxu0 0.0
    %280 = vmatpush1.msra.mxu0 %v248
    %281 = vmatprep.subr.mxu0 0.0
    %282 = vmatpush1.msra.mxu0 %v249
    %283 = vmatprep.subr.mxu0 0.0
    %284 = vmatpush1.msra.mxu0 %v250
    %285 = vmatprep.subr.mxu0 0.0
    %286 = vmatpush1.msra.mxu0 %v251
    %287 = vmatprep.subr.mxu0 0.0
    %288 = vmatpush1.msra.mxu0 %v252
    %289 = vmatprep.subr.mxu0 0.0
    %290 = vmatpush1.msra.mxu0 %v253
    %291 = vmatprep.subr.mxu0 0.0
    %292 = vmatpush1.msra.mxu0 %v254
    %293 = vmatprep.subr.mxu0 0.0
    %294 = vmatpush1.msra.mxu0 %v255
    %295 = vmatprep.subr.mxu0 0.0
    %296 = vmatpush1.msra.mxu0 0.0
    %297 = vmatprep.subr.mxu0 0.0
    %298 = vmatpush1.msra.mxu0 0.0
    %299 = vmatprep.subr.mxu0 0.0
    %300 = vmatpush1.msra.mxu0 0.0
    %301 = vmatprep.subr.mxu0 0.0
    %302 = vmatpush1.msra.mxu0 0.0
    %303 = vmatprep.subr.mxu0 0.0
    %304 = vmatpush1.msra.mxu0 0.0
    %305 = vmatprep.subr.mxu0 0.0
    %306 = vmatpush1.msra.mxu0 0.0
    %307 = vmatprep.subr.mxu0 0.0
    %308 = vmatpush1.msra.mxu0 0.0
    %309 = vmatprep.subr.mxu0 0.0
    %310 = vmatpush1.msra.mxu0 0.0
    %311 = vmatprep.subr.mxu0 0.0
    %312 = vmatpush1.msra.mxu0 0.0
    %313 = vmatprep.subr.mxu0 0.0
    %314 = vmatpush1.msra.mxu0 0.0
    %315 = vmatprep.subr.mxu0 0.0
    %316 = vmatpush1.msra.mxu0 0.0
    %317 = vmatprep.subr.mxu0 0.0
    %318 = vmatpush1.msra.mxu0 0.0
    %319 = vmatprep.subr.mxu0 0.0
    %320 = vmatpush1.msra.mxu0 0.0
    %321 = vmatprep.subr.mxu0 0.0
    %322 = vmatpush1.msra.mxu0 0.0
    %323 = vmatprep.subr.mxu0 0.0
    %324 = vmatpush1.msra.mxu0 0.0
    %325 = vmatprep.subr.mxu0 0.0
    %326 = vmatpush1.msra.mxu0 0.0
    %327 = vmatprep.mubr.f32.mxu0 0.0
    %328 = vmatmul.mubr.f32.gmra.mrb[0].mxu0 %v238
    %v329 = vpop.f32.mrb[0].mxu0
    %v330 = vadd.f32 %v261, %v329
    %v331 = vpop.f32.mrb[0].mxu0
    %332 = vmatprep.mubr.f32.mxu0 0.0
    %333 = vmatmul.mubr.f32.gmra.mrb[0].mxu0 %v239
    %v334 = vpop.f32.mrb[0].mxu0
    %v335 = vadd.f32 %v261, %v334
    %v336 = vpop.f32.mrb[0].mxu0
    %337 = vdwg.mxu0
    %v338 = vmax.f32 %v330, 0.0
    %v339 = vmax.f32 %v335, 0.0
    %v340 = vld [vmem:[%s4] sm:$0xff]
    %v341 = vmul.f32 %v338, %v340
    %v342 = vmul.f32 %v339, %v340
    %v343 = vrot.slane %v341, 4
    %v344 = vmax.f32 %v341, %v343
    %v345 = vrot.slane %v344, 2
    %v346 = vmax.f32 %v344, %v345
    %v347 = vrot.slane %v346, 1
    %v348 = vmax.f32 %v346, %v347
    %v349 = vrot.slane %v342, 4
    %v350 = vmax.f32 %v342, %v349
    %v351 = vrot.slane %v350, 2
    %v352 = vmax.f32 %v350, %v351
    %v353 = vrot.slane %v352, 1
    %v354 = vmax.f32 %v352, %v353
    %v355 = vld [vmem:[#allocation5] sm:$0xff]
    %v356 = vld [vmem:[#allocation5 + $0x8] sm:$0xff]
    %v357 = vld [vmem:[#allocation5 + $0x10] sm:$0xff]
    %v358 = vld [vmem:[#allocation5 + $0x18] sm:$0xff]
    %v359 = vld [vmem:[#allocation5 + $0x20] sm:$0xff]
    %v360 = vld [vmem:[#allocation5 + $0x28] sm:$0xff]
    %v361 = vld [vmem:[#allocation5 + $0x30] sm:$0xff]
    %v362 = vld [vmem:[#allocation5 + $0x38] sm:$0xff]
    %v363 = vld [vmem:[#allocation5 + $0x40] sm:$0xff]
    %v364 = vld [vmem:[#allocation5 + $0x48] sm:$0xff]
    %v365 = vld [vmem:[#allocation5 + $0x50] sm:$0xff]
    %v366 = vld [vmem:[#allocation5 + $0x58] sm:$0xff]
    %v367 = vld [vmem:[#allocation5 + $0x60] sm:$0xff]
    %v368 = vld [vmem:[#allocation5 + $0x68] sm:$0xff]
    %v369 = vld [vmem:[#allocation5 + $0x70] sm:$0xff]
    %v370 = vld [vmem:[#allocation5 + $0x78] sm:$0xff]
    %v371 = vld [vmem:[%s6] sm:$0x1]
    %v373 = vlaneseq
    %v374 = vshrl.u32 %v373, 7
    %v375 = vsub.s32 0, %v374
    %v376 = vrot.slane %v371, %v375
    %vm380 = vcmask 1041409
    %v381 = vsel %vm380, %v354, %v348
    %383 = vmatprep.subr.mxu0 0.0
    %384 = vmatpush1.msra.mxu0 %v355
    %385 = vmatprep.subr.mxu0 0.0
    %386 = vmatpush1.msra.mxu0 %v356
    %387 = vmatprep.subr.mxu0 0.0
    %388 = vmatpush1.msra.mxu0 %v357
    %389 = vmatprep.subr.mxu0 0.0
    %390 = vmatpush1.msra.mxu0 %v358
    %391 = vmatprep.subr.mxu0 0.0
    %392 = vmatpush1.msra.mxu0 %v359
    %393 = vmatprep.subr.mxu0 0.0
    %394 = vmatpush1.msra.mxu0 %v360
    %395 = vmatprep.subr.mxu0 0.0
    %396 = vmatpush1.msra.mxu0 %v361
    %397 = vmatprep.subr.mxu0 0.0
    %398 = vmatpush1.msra.mxu0 %v362
    %399 = vmatprep.subr.mxu0 0.0
    %400 = vmatpush1.msra.mxu0 %v363
    %401 = vmatprep.subr.mxu0 0.0
    %402 = vmatpush1.msra.mxu0 %v364
    %403 = vmatprep.subr.mxu0 0.0
    %404 = vmatpush1.msra.mxu0 %v365
    %405 = vmatprep.subr.mxu0 0.0
    %406 = vmatpush1.msra.mxu0 %v366
    %407 = vmatprep.subr.mxu0 0.0
    %408 = vmatpush1.msra.mxu0 %v367
    %409 = vmatprep.subr.mxu0 0.0
    %410 = vmatpush1.msra.mxu0 %v368
    %411 = vmatprep.subr.mxu0 0.0
    %412 = vmatpush1.msra.mxu0 %v369
    %413 = vmatprep.subr.mxu0 0.0
    %414 = vmatpush1.msra.mxu0 %v370
    %415 = vmatprep.subr.mxu0 0.0
    %416 = vmatpush1.msra.mxu0 0.0
    %417 = vmatprep.subr.mxu0 0.0
    %418 = vmatpush1.msra.mxu0 0.0
    %419 = vmatprep.subr.mxu0 0.0
    %420 = vmatpush1.msra.mxu0 0.0
    %421 = vmatprep.subr.mxu0 0.0
    %422 = vmatpush1.msra.mxu0 0.0
    %423 = vmatprep.subr.mxu0 0.0
    %424 = vmatpush1.msra.mxu0 0.0
    %425 = vmatprep.subr.mxu0 0.0
    %426 = vmatpush1.msra.mxu0 0.0
    %427 = vmatprep.subr.mxu0 0.0
    %428 = vmatpush1.msra.mxu0 0.0
    %429 = vmatprep.subr.mxu0 0.0
    %430 = vmatpush1.msra.mxu0 0.0
    %431 = vmatprep.subr.mxu0 0.0
    %432 = vmatpush1.msra.mxu0 0.0
    %433 = vmatprep.subr.mxu0 0.0
    %434 = vmatpush1.msra.mxu0 0.0
    %435 = vmatprep.subr.mxu0 0.0
    %436 = vmatpush1.msra.mxu0 0.0
    %437 = vmatprep.subr.mxu0 0.0
    %438 = vmatpush1.msra.mxu0 0.0
    %439 = vmatprep.subr.mxu0 0.0
    %440 = vmatpush1.msra.mxu0 0.0
    %441 = vmatprep.subr.mxu0 0.0
    %442 = vmatpush1.msra.mxu0 0.0
    %443 = vmatprep.subr.mxu0 0.0
    %444 = vmatpush1.msra.mxu0 0.0
    %445 = vmatprep.subr.mxu0 0.0
    %446 = vmatpush1.msra.mxu0 0.0
    %447 = vmatprep.mubr.f32.mxu0 0.0
    %448 = vmatmul.mubr.f32.gmra.mrb[0].mxu0 %v381
    %v449 = vpop.f32.mrb[0].mxu0
    %v450 = vadd.f32 %v376, %v449
    %v451 = vpop.f32.mrb[0].mxu0
    %452 = vdwg.mxu0
    %453 = vst [vmem:[#allocation7] sm:$0x3] %v450
    // Predicated region
    $region38: #{tpu_custom_call.1} parent=1 // pred_check
      _
    $region39: #{tpu_custom_call.1} parent=1 // pred_check_branch
      %455 = sbr.rel (0) target = $region41
    $region40: #{tpu_custom_call.1} parent=1 // pred_region
      %s457 = ssub.s32 32, 32
      %458 = vsyncadd [#allocation4], %s457
      %s460 = sshll.u32 [#allocation7], 4
      %s461 = int_to_ptr.vmem [resolvable:$true] %s460
      %463 = dma.vmem_to_hbm [thread:$0]  %s461, 32, %s7, [#allocation4]
    $region41: #{tpu_custom_call.1} parent=1 // pred_fallthru
      _
    // Predicated region
    $region42: #{tpu_custom_call.1} parent=1 // pred_check
      _
    $region43: #{tpu_custom_call.1} parent=1 // pred_check_branch
      %465 = sbr.rel (0) target = $region45
    $region44: #{tpu_custom_call.1} parent=1 // pred_region
      %466 = dma.done [#allocation4], 32
    $region45: #{tpu_custom_call.1} parent=1 // pred_fallthru
      _
    %467 = vsyncpa [#allocation3], 1
    %468 = vsyncpa [#allocation6], 1
    %469 = vsyncpa [#allocation4], 1

</llo_original>
